<compile_context>
chip_gen: v7x
topology: tpu7x:2x2x1
jax: 0.10.0
libtpu: 0.0.40
codegen_flags: <defaults>
</compile_context>

<pallas_src>
import functools
import math

import jax
import jax.numpy as jnp
from jax.experimental import pallas as pl
from jax.experimental.pallas import tpu as pltpu


def _round_up(x, m):
    return ((x + m - 1) // m) * m


# ----------------------------------------------------------------------------
# Kernel 1: support[i-tile] = sum_k x[i-tile, k-tile] @ W[k-tile, :]
# ----------------------------------------------------------------------------
def _xw_kernel(x_ref, w_ref, o_ref, acc_ref):
    k = pl.program_id(1)

    @pl.when(k == 0)
    def _():
        acc_ref[...] = jnp.zeros_like(acc_ref)

    acc_ref[...] += jnp.dot(x_ref[...], w_ref[...],
                            preferred_element_type=jnp.float32)

    @pl.when(k == pl.num_programs(1) - 1)
    def _():
        o_ref[...] = acc_ref[...].astype(o_ref.dtype)


# ----------------------------------------------------------------------------
# Kernel 2: out[i-tile] = sum_k adj[i-tile, k-tile] @ support[k-tile] + bias
# ----------------------------------------------------------------------------
def _adj_support_kernel(adj_ref, s_ref, bias_ref, o_ref, acc_ref):
    k = pl.program_id(1)

    @pl.when(k == 0)
    def _():
        acc_ref[...] = jnp.zeros_like(acc_ref)

    acc_ref[...] += jnp.dot(adj_ref[...], s_ref[...],
                            preferred_element_type=jnp.float32)

    @pl.when(k == pl.num_programs(1) - 1)
    def _():
        o_ref[...] = (acc_ref[...] + bias_ref[...]).astype(o_ref.dtype)


# ----------------------------------------------------------------------------
# Wrapper
# ----------------------------------------------------------------------------
@functools.partial(jax.jit,
                   static_argnames=("compute_dtype", "tile_m", "tile_k",
                                    "tile_f"))
def graph_convolution_forward(x, adj, weight, bias=None, *,
                              compute_dtype=jnp.bfloat16,
                              tile_m=512, tile_k=512, tile_f=512):
    """Pallas implementation of GraphConvolution.forward(input, adj).

    x      : [N, in_f]  float32
    adj    : [N, N]     float32 (dense, e.g. row-normalized with self loops)
    weight : [in_f, out_f]
    bias   : [out_f] or None
    """
    N, in_f = x.shape
    in_f2, out_f = weight.shape
    assert in_f == in_f2 and adj.shape == (N, N)

    # Lane-dense feature dims (multiples of 128) -> unmasked vector stores.
    out_f_p = _round_up(out_f, 128)

    # Reduction tiling over in_features for x @ W.
    in_f_p = _round_up(in_f, 128)
    tf = min(tile_f, in_f_p)
    in_f_p = _round_up(in_f_p, tf)

    # MXU-shaped node tiles; shrink for small graphs so padding stays modest.
    tm = min(tile_m, _round_up(N, 128))
    tk = min(tile_k, _round_up(N, 128))
    n_pad = _round_up(N, math.lcm(tm, tk))

    cdt = jnp.dtype(compute_dtype)
    itemsize = cdt.itemsize

    x_p = jnp.pad(x.astype(cdt), ((0, n_pad - N), (0, in_f_p - in_f)))
    adj_p = jnp.pad(adj.astype(cdt), ((0, n_pad - N), (0, n_pad - N)))
    w_p = jnp.pad(weight.astype(cdt),
                  ((0, in_f_p - in_f), (0, out_f_p - out_f)))
    if bias is None:
        b_p = jnp.zeros((1, out_f_p), jnp.float32)
    else:
        b_p = jnp.pad(bias.astype(jnp.float32),
                      (0, out_f_p - out_f)).reshape(1, out_f_p)

    # ------------------ stage 1: support = x @ W ------------------
    grid1 = (n_pad // tm, in_f_p // tf)
    support = pl.pallas_call(
        _xw_kernel,
        out_shape=jax.ShapeDtypeStruct((n_pad, out_f_p), cdt),
        grid_spec=pltpu.PrefetchScalarGridSpec(
            num_scalar_prefetch=0,
            grid=grid1,                                   # reduction axis last
            in_specs=[
                pl.BlockSpec((tm, tf), lambda i, k: (i, k)),          # x
                pl.BlockSpec((tf, out_f_p), lambda i, k: (k, 0)),     # weight
            ],
            out_specs=pl.BlockSpec((tm, out_f_p), lambda i, k: (i, 0)),
            scratch_shapes=[pltpu.VMEM((tm, out_f_p), jnp.float32)],
        ),
        compiler_params=pltpu.CompilerParams(
            dimension_semantics=("parallel", "arbitrary"),
            vmem_limit_bytes=64 * 1024 * 1024,
        ),
        cost_estimate=pl.CostEstimate(
            flops=int(2 * n_pad * in_f_p * out_f_p),
            transcendentals=0,
            bytes_accessed=int(x_p.size * itemsize
                               + grid1[0] * w_p.size * itemsize
                               + n_pad * out_f_p * itemsize),
        ),
    )(x_p, w_p)

    # -------------- stage 2: out = adj @ support + bias --------------
    grid2 = (n_pad // tm, n_pad // tk)
    out_padded = pl.pallas_call(
        _adj_support_kernel,
        out_shape=jax.ShapeDtypeStruct((n_pad, out_f_p), jnp.float32),
        grid_spec=pltpu.PrefetchScalarGridSpec(
            num_scalar_prefetch=0,
            grid=grid2,                                   # reduction axis last
            in_specs=[
                pl.BlockSpec((tm, tk), lambda i, k: (i, k)),          # adj
                pl.BlockSpec((tk, out_f_p), lambda i, k: (k, 0)),     # support
                pl.BlockSpec((1, out_f_p), lambda i, k: (0, 0)),      # bias
            ],
            out_specs=pl.BlockSpec((tm, out_f_p), lambda i, k: (i, 0)),
            scratch_shapes=[pltpu.VMEM((tm, out_f_p), jnp.float32)],
        ),
        compiler_params=pltpu.CompilerParams(
            dimension_semantics=("parallel", "arbitrary"),
            vmem_limit_bytes=64 * 1024 * 1024,
        ),
        cost_estimate=pl.CostEstimate(
            flops=int(2 * n_pad * n_pad * out_f_p),
            transcendentals=0,
            bytes_accessed=int(adj_p.size * itemsize
                               + grid2[0] * n_pad * out_f_p * itemsize
                               + n_pad * out_f_p * 4
                               + out_f_p * 4),
        ),
    )(adj_p, support, b_p)

    return out_padded[:N, :out_f]


# ----------------------------------------------------------------------------
# Parameter init (mirrors reset_parameters: uniform(-stdv, stdv), stdv=1/sqrt(out))
# ----------------------------------------------------------------------------
def init_graph_convolution_params(key, in_features, out_features):
    stdv = 1.0 / math.sqrt(out_features)
    kw, kb = jax.random.split(key)
    weight = jax.random.uniform(
        kw, (in_features, out_features), jnp.float32, minval=-stdv, maxval=stdv
    )
    bias = jax.random.uniform(
        kb, (out_features,), jnp.float32, minval=-stdv, maxval=stdv
    )
    return weight, bias


# ----------------------------------------------------------------------------
# Main
# ----------------------------------------------------------------------------
if __name__ == "__main__":
    key = jax.random.PRNGKey(0)
    k_x, k_adj, k_p = jax.random.split(key, 3)

    N_NODES = 64       # number of graph nodes
    IN_FEATURES = 32   # input feature dim
    OUT_FEATURES = 16  # hidden units (args.hidden default)

    # Node features.
    x = jax.random.normal(k_x, (N_NODES, IN_FEATURES), jnp.float32)

    # Symmetric, row-normalized dense adjacency with self-loops (typical GCN adj).
    a = (jax.random.uniform(k_adj, (N_NODES, N_NODES)) < 0.1).astype(jnp.float32)
    a = jnp.maximum(a, a.T) + jnp.eye(N_NODES, dtype=jnp.float32)
    adj = a / jnp.sum(a, axis=1, keepdims=True)

    weight, bias = init_graph_convolution_params(k_p, IN_FEATURES, OUT_FEATURES)

    # Plain-JAX reference (same math as the PyTorch forward).
    ref = adj @ (x @ weight) + bias

    # f32 compute path: tight functional check.
    out_f32 = jax.block_until_ready(
        graph_convolution_forward(x, adj, weight, bias,
                                  compute_dtype=jnp.float32))
    assert out_f32.shape == (N_NODES, OUT_FEATURES)
    assert jnp.allclose(out_f32, ref, atol=1e-4, rtol=1e-4)

    # bf16 compute path (v6e/v7x MXU-native, f32 accumulation): looser tolerance.
    out_bf16 = jax.block_until_ready(
        graph_convolution_forward(x, adj, weight, bias,
                                  compute_dtype=jnp.bfloat16))
    assert out_bf16.shape == (N_NODES, OUT_FEATURES)
    assert jnp.allclose(out_bf16, ref, atol=5e-2, rtol=5e-2)

    # No-bias path (GraphConvolution(bias=False)).
    out_nb = jax.block_until_ready(
        graph_convolution_forward(x, adj, weight, None,
                                  compute_dtype=jnp.float32))
    assert jnp.allclose(out_nb, adj @ (x @ weight), atol=1e-4, rtol=1e-4)

    print("KERNEL_OK")
</pallas_src>

<mosaic_0001>
module attributes {stable_mosaic.version = 11 : i64} {
  func.func @_xw_kernel(%arg0: i32, %arg1: i32, %arg2: memref<128x128xf32, #tpu.memory_space<vmem>>, %arg3: memref<128x128xf32, #tpu.memory_space<vmem>>, %arg4: memref<128x128xf32, #tpu.memory_space<vmem>>, %arg5: memref<128x128xf32, #tpu.memory_space<vmem>>) attributes {dimension_semantics = [#tpu.dimension_semantics<parallel>, #tpu.dimension_semantics<arbitrary>], iteration_bounds = array<i64: 1, 1>, scalar_prefetch = 0 : i64, scratch_operands = 1 : i64, tpu.core_type = #tpu.core_type<tc>, window_params = [{transform_indices = @transform_0, window_bounds = array<i64: 128, 128>}, {transform_indices = @transform_1, window_bounds = array<i64: 128, 128>}, {transform_indices = @transform_2, window_bounds = array<i64: 128, 128>}]} {
    %c0_i32 = arith.constant 0 : i32
    %0 = arith.cmpi eq, %arg1, %c0_i32 : i32
    %1 = arith.extui %0 : i1 to i32
    %c0_i32_0 = arith.constant 0 : i32
    %2 = arith.cmpi ne, %1, %c0_i32_0 : i32
    scf.if %2 {
      %cst_10 = arith.constant 0.000000e+00 : f32
      %12 = vector.broadcast %cst_10 : f32 to vector<128x128xf32>
      %c0_11 = arith.constant 0 : index
      %c0_12 = arith.constant 0 : index
      %13 = vector.load %arg5[%c0_11, %c0_12] : memref<128x128xf32, #tpu.memory_space<vmem>>, vector<128x128xf32>
      tpu.vector_store %arg5[%c0_11, %c0_12], %12 {strides = array<i32>} : memref<128x128xf32, #tpu.memory_space<vmem>>, vector<128x128xf32>,
    } else {
    }
    %c0 = arith.constant 0 : index
    %c0_1 = arith.constant 0 : index
    %3 = vector.load %arg5[%c0, %c0_1] : memref<128x128xf32, #tpu.memory_space<vmem>>, vector<128x128xf32>
    %c0_2 = arith.constant 0 : index
    %c0_3 = arith.constant 0 : index
    %4 = vector.load %arg2[%c0_2, %c0_3] : memref<128x128xf32, #tpu.memory_space<vmem>>, vector<128x128xf32>
    %c0_4 = arith.constant 0 : index
    %c0_5 = arith.constant 0 : index
    %5 = vector.load %arg3[%c0_4, %c0_5] : memref<128x128xf32, #tpu.memory_space<vmem>>, vector<128x128xf32>
    %cst = arith.constant dense<0.000000e+00> : vector<128x128xf32>
    %6 = tpu.matmul %4, %5, %cst {dimension_numbers = #tpu.dot_dimension_numbers<[1], [0], [0], [1], [0, 0, 1, 1], [], []>} : vector<128x128xf32>, vector<128x128xf32>, vector<128x128xf32> -> vector<128x128xf32>
    %7 = arith.addf %3, %6 : vector<128x128xf32>
    %c0_6 = arith.constant 0 : index
    %c0_7 = arith.constant 0 : index
    %8 = vector.load %arg5[%c0_6, %c0_7] : memref<128x128xf32, #tpu.memory_space<vmem>>, vector<128x128xf32>
    tpu.vector_store %arg5[%c0_6, %c0_7], %7 {strides = array<i32>} : memref<128x128xf32, #tpu.memory_space<vmem>>, vector<128x128xf32>,
    %c0_i32_8 = arith.constant 0 : i32
    %9 = arith.cmpi eq, %arg1, %c0_i32_8 : i32
    %10 = arith.extui %9 : i1 to i32
    %c0_i32_9 = arith.constant 0 : i32
    %11 = arith.cmpi ne, %10, %c0_i32_9 : i32
    scf.if %11 {
      %c0_10 = arith.constant 0 : index
      %c0_11 = arith.constant 0 : index
      %12 = vector.load %arg5[%c0_10, %c0_11] : memref<128x128xf32, #tpu.memory_space<vmem>>, vector<128x128xf32>
      %c0_12 = arith.constant 0 : index
      %c0_13 = arith.constant 0 : index
      %13 = vector.load %arg4[%c0_12, %c0_13] : memref<128x128xf32, #tpu.memory_space<vmem>>, vector<128x128xf32>
      tpu.vector_store %arg4[%c0_12, %c0_13], %12 {strides = array<i32>} : memref<128x128xf32, #tpu.memory_space<vmem>>, vector<128x128xf32>,
    } else {
    }
    return
  }
  func.func @transform_0(%arg0: i32, %arg1: i32) -> (i32, i32) {
    %c0_i32 = arith.constant 0 : i32
    return %arg0, %arg1 : i32, i32
  }
  func.func @transform_1(%arg0: i32, %arg1: i32) -> (i32, i32) {
    %c0_i32 = arith.constant 0 : i32
    %c0_i32_0 = arith.constant 0 : i32
    return %arg1, %c0_i32 : i32, i32
  }
  func.func @transform_2(%arg0: i32, %arg1: i32) -> (i32, i32) {
    %c0_i32 = arith.constant 0 : i32
    %c0_i32_0 = arith.constant 0 : i32
    return %arg0, %c0_i32 : i32, i32
  }
}

module attributes {stable_mosaic.version = 11 : i64} {
  func.func @_adj_support_kernel(%arg0: i32, %arg1: i32, %arg2: memref<128x128xf32, #tpu.memory_space<vmem>>, %arg3: memref<128x128xf32, #tpu.memory_space<vmem>>, %arg4: memref<1x128xf32, #tpu.memory_space<vmem>>, %arg5: memref<128x128xf32, #tpu.memory_space<vmem>>, %arg6: memref<128x128xf32, #tpu.memory_space<vmem>>) attributes {dimension_semantics = [#tpu.dimension_semantics<parallel>, #tpu.dimension_semantics<arbitrary>], iteration_bounds = array<i64: 1, 1>, scalar_prefetch = 0 : i64, scratch_operands = 1 : i64, tpu.core_type = #tpu.core_type<tc>, window_params = [{transform_indices = @transform_0, window_bounds = array<i64: 128, 128>}, {transform_indices = @transform_1, window_bounds = array<i64: 128, 128>}, {pipeline_mode = #tpu.pipeline_mode<synchronous>, transform_indices = @transform_2, window_bounds = array<i64: 1, 128>}, {transform_indices = @transform_3, window_bounds = array<i64: 128, 128>}]} {
    %c0_i32 = arith.constant 0 : i32
    %0 = arith.cmpi eq, %arg1, %c0_i32 : i32
    %1 = arith.extui %0 : i1 to i32
    %c0_i32_0 = arith.constant 0 : i32
    %2 = arith.cmpi ne, %1, %c0_i32_0 : i32
    scf.if %2 {
      %cst_10 = arith.constant 0.000000e+00 : f32
      %12 = vector.broadcast %cst_10 : f32 to vector<128x128xf32>
      %c0_11 = arith.constant 0 : index
      %c0_12 = arith.constant 0 : index
      %13 = vector.load %arg6[%c0_11, %c0_12] : memref<128x128xf32, #tpu.memory_space<vmem>>, vector<128x128xf32>
      tpu.vector_store %arg6[%c0_11, %c0_12], %12 {strides = array<i32>} : memref<128x128xf32, #tpu.memory_space<vmem>>, vector<128x128xf32>,
    } else {
    }
    %c0 = arith.constant 0 : index
    %c0_1 = arith.constant 0 : index
    %3 = vector.load %arg6[%c0, %c0_1] : memref<128x128xf32, #tpu.memory_space<vmem>>, vector<128x128xf32>
    %c0_2 = arith.constant 0 : index
    %c0_3 = arith.constant 0 : index
    %4 = vector.load %arg2[%c0_2, %c0_3] : memref<128x128xf32, #tpu.memory_space<vmem>>, vector<128x128xf32>
    %c0_4 = arith.constant 0 : index
    %c0_5 = arith.constant 0 : index
    %5 = vector.load %arg3[%c0_4, %c0_5] : memref<128x128xf32, #tpu.memory_space<vmem>>, vector<128x128xf32>
    %cst = arith.constant dense<0.000000e+00> : vector<128x128xf32>
    %6 = tpu.matmul %4, %5, %cst {dimension_numbers = #tpu.dot_dimension_numbers<[1], [0], [0], [1], [0, 0, 1, 1], [], []>} : vector<128x128xf32>, vector<128x128xf32>, vector<128x128xf32> -> vector<128x128xf32>
    %7 = arith.addf %3, %6 : vector<128x128xf32>
    %c0_6 = arith.constant 0 : index
    %c0_7 = arith.constant 0 : index
    %8 = vector.load %arg6[%c0_6, %c0_7] : memref<128x128xf32, #tpu.memory_space<vmem>>, vector<128x128xf32>
    tpu.vector_store %arg6[%c0_6, %c0_7], %7 {strides = array<i32>} : memref<128x128xf32, #tpu.memory_space<vmem>>, vector<128x128xf32>,
    %c0_i32_8 = arith.constant 0 : i32
    %9 = arith.cmpi eq, %arg1, %c0_i32_8 : i32
    %10 = arith.extui %9 : i1 to i32
    %c0_i32_9 = arith.constant 0 : i32
    %11 = arith.cmpi ne, %10, %c0_i32_9 : i32
    scf.if %11 {
      %c0_10 = arith.constant 0 : index
      %c0_11 = arith.constant 0 : index
      %12 = vector.load %arg6[%c0_10, %c0_11] : memref<128x128xf32, #tpu.memory_space<vmem>>, vector<128x128xf32>
      %c0_12 = arith.constant 0 : index
      %c0_13 = arith.constant 0 : index
      %13 = vector.load %arg4[%c0_12, %c0_13] : memref<1x128xf32, #tpu.memory_space<vmem>>, vector<1x128xf32>
      %14 = vector.broadcast %13 : vector<1x128xf32> to vector<128x128xf32>
      %15 = arith.addf %12, %14 : vector<128x128xf32>
      %c0_14 = arith.constant 0 : index
      %c0_15 = arith.constant 0 : index
      %16 = vector.load %arg5[%c0_14, %c0_15] : memref<128x128xf32, #tpu.memory_space<vmem>>, vector<128x128xf32>
      tpu.vector_store %arg5[%c0_14, %c0_15], %15 {strides = array<i32>} : memref<128x128xf32, #tpu.memory_space<vmem>>, vector<128x128xf32>,
    } else {
    }
    return
  }
  func.func @transform_0(%arg0: i32, %arg1: i32) -> (i32, i32) {
    %c0_i32 = arith.constant 0 : i32
    return %arg0, %arg1 : i32, i32
  }
  func.func @transform_1(%arg0: i32, %arg1: i32) -> (i32, i32) {
    %c0_i32 = arith.constant 0 : i32
    %c0_i32_0 = arith.constant 0 : i32
    return %arg1, %c0_i32 : i32, i32
  }
  func.func @transform_2(%arg0: i32, %arg1: i32) -> (i32, i32) {
    %c0_i32 = arith.constant 0 : i32
    %c0_i32_0 = arith.constant 0 : i32
    %c0_i32_1 = arith.constant 0 : i32
    return %c0_i32, %c0_i32_0 : i32, i32
  }
  func.func @transform_3(%arg0: i32, %arg1: i32) -> (i32, i32) {
    %c0_i32 = arith.constant 0 : i32
    %c0_i32_0 = arith.constant 0 : i32
    return %arg0, %c0_i32 : i32, i32
  }
}

</mosaic_0001>

<llo_original>
// kernel: graph_convolution_forward.2
$region0: #{graph_convolution_forward.2}
  #allocation0 [shape = 'u32[]', space=smem, size = 0x4, offset = 0x4, fixed_abs, tag = 'smem constant byte address 0x4 - core index']
  #allocation1 [shape = 'u32[144,128]{1,0:T(1,128)}', space=vmem, size = 0x12000, scoped, tag = 'internal scratch']
  #allocation2 [shape = 'f32[128,128]{1,0:T(8,128)}', space=vmem, size = 0x10000, scoped, tag = 'scratch operand']
  %s0 = inlined_call_operand.hbm [shape: f32[128,128], index: 0, kind: input, shape index: {}]
  %s1 = inlined_call_operand.hbm [shape: f32[128,128], index: 1, kind: input, shape index: {}]
  %s2 = inlined_call_operand.hbm [shape: f32[128,128], index: 2, kind: output, shape index: {}]
  %s3 = sld [smem:[#allocation0]]
  $region34: #{graph_convolution_forward.2} parent=0
    _
  %s5 = ssub.s32 1, %s3
  %s6 = scalar_select 0, %s5, %s3
  $region1: #{graph_convolution_forward.2} parent=0
    #allocation3 [shape = 'u8[65536]{0}', space=vmem, size = 0x10000, scoped, tag = 'input window, operand 0, single buffered']
    #allocation4 [shape = 's32[1]{0}', space=sflag, size = 0x4, scoped, tag = 'scoped memory for graph_convolution_forward.2']
    #allocation5 [shape = 's32[1]{0}', space=sflag, size = 0x4, scoped, tag = 'scoped memory for graph_convolution_forward.2']
    #allocation6 [shape = 'u8[65536]{0}', space=vmem, size = 0x10000, scoped, tag = 'input window, operand 1, single buffered']
    #allocation7 [shape = 's32[1]{0}', space=sflag, size = 0x4, scoped, tag = 'scoped memory for graph_convolution_forward.2']
    #allocation8 [shape = 'u8[65536]{0}', space=vmem, size = 0x10000, scoped, tag = 'output window, operand 0, single buffered']
    %7 = vsyncpa [#allocation4], 0
    %8 = vsyncpa [#allocation7], 0
    %9 = vsyncpa [#allocation5], 0
    // Predicated region
    $region2: #{graph_convolution_forward.2} parent=1 // pred_check
      _
    $region3: #{graph_convolution_forward.2} parent=1 // pred_check_branch
      %11 = sbr.rel (0) target = $region5
    $region4: #{graph_convolution_forward.2} parent=1 // pred_region
      %s13 = ssub.s32 2048, 2048
      %14 = vsyncadd [#allocation4], %s13
      %s15 = sshll.u32 [#allocation3], 4
      %s16 = int_to_ptr.vmem [resolvable:$true] %s15
      %21 = dma.hbm_to_vmem [thread:$0]  %s0, 2048, %s16, [#allocation4], 128, 128, 8
    $region5: #{graph_convolution_forward.2} parent=1 // pred_fallthru
      _
    // Predicated region
    $region6: #{graph_convolution_forward.2} parent=1 // pred_check
      _
    $region7: #{graph_convolution_forward.2} parent=1 // pred_check_branch
      %23 = sbr.rel (0) target = $region9
    $region8: #{graph_convolution_forward.2} parent=1 // pred_region
      %s25 = ssub.s32 2048, 2048
      %26 = vsyncadd [#allocation7], %s25
      %s27 = sshll.u32 [#allocation6], 4
      %s28 = int_to_ptr.vmem [resolvable:$true] %s27
      %33 = dma.hbm_to_vmem [thread:$0]  %s1, 2048, %s28, [#allocation7], 128, 128, 8
    $region9: #{graph_convolution_forward.2} parent=1 // pred_fallthru
      _
    // Predicated region
    $region10: #{graph_convolution_forward.2} parent=1 // pred_check
      _
    $region11: #{graph_convolution_forward.2} parent=1 // pred_check_branch
      %35 = sbr.rel (0) target = $region13
    $region12: #{graph_convolution_forward.2} parent=1 // pred_region
      %36 = dma.done [#allocation4], 2048
    $region13: #{graph_convolution_forward.2} parent=1 // pred_fallthru
      _
    // Predicated region
    $region14: #{graph_convolution_forward.2} parent=1 // pred_check
      _
    $region15: #{graph_convolution_forward.2} parent=1 // pred_check_branch
      %38 = sbr.rel (0) target = $region17
    $region16: #{graph_convolution_forward.2} parent=1 // pred_region
      %39 = dma.done [#allocation7], 2048
    $region17: #{graph_convolution_forward.2} parent=1 // pred_fallthru
      _
    %p40 = scmp.eq.s32.totalorder 0, 0
    // Predicated region
    $region18: #{graph_convolution_forward.2} parent=1 // pred_check
      %p41 = pneg %p40
    $region19: #{graph_convolution_forward.2} parent=1 // pred_check_branch
      %43 = sbr.rel (%p41) target = $region21
    $region20: #{graph_convolution_forward.2} parent=1 // pred_region
      %44 = vst [vmem:[#allocation2] sm:$0xff] 0.0
      %45 = vst [vmem:[#allocation2 + $0x8] sm:$0xff] 0.0
      %46 = vst [vmem:[#allocation2 + $0x10] sm:$0xff] 0.0
      %47 = vst [vmem:[#allocation2 + $0x18] sm:$0xff] 0.0
      %48 = vst [vmem:[#allocation2 + $0x20] sm:$0xff] 0.0
      %49 = vst [vmem:[#allocation2 + $0x28] sm:$0xff] 0.0
      %50 = vst [vmem:[#allocation2 + $0x30] sm:$0xff] 0.0
      %51 = vst [vmem:[#allocation2 + $0x38] sm:$0xff] 0.0
      %52 = vst [vmem:[#allocation2 + $0x40] sm:$0xff] 0.0
      %53 = vst [vmem:[#allocation2 + $0x48] sm:$0xff] 0.0
      %54 = vst [vmem:[#allocation2 + $0x50] sm:$0xff] 0.0
      %55 = vst [vmem:[#allocation2 + $0x58] sm:$0xff] 0.0
      %56 = vst [vmem:[#allocation2 + $0x60] sm:$0xff] 0.0
      %57 = vst [vmem:[#allocation2 + $0x68] sm:$0xff] 0.0
      %58 = vst [vmem:[#allocation2 + $0x70] sm:$0xff] 0.0
      %59 = vst [vmem:[#allocation2 + $0x78] sm:$0xff] 0.0
    $region21: #{graph_convolution_forward.2} parent=1 // pred_fallthru
      _
    %v60 = vld [vmem:[#allocation2] sm:$0xff]
    %v61 = vld [vmem:[#allocation2 + $0x8] sm:$0xff]
    %v62 = vld [vmem:[#allocation2 + $0x10] sm:$0xff]
    %v63 = vld [vmem:[#allocation2 + $0x18] sm:$0xff]
    %v64 = vld [vmem:[#allocation2 + $0x20] sm:$0xff]
    %v65 = vld [vmem:[#allocation2 + $0x28] sm:$0xff]
    %v66 = vld [vmem:[#allocation2 + $0x30] sm:$0xff]
    %v67 = vld [vmem:[#allocation2 + $0x38] sm:$0xff]
    %v68 = vld [vmem:[#allocation2 + $0x40] sm:$0xff]
    %v69 = vld [vmem:[#allocation2 + $0x48] sm:$0xff]
    %v70 = vld [vmem:[#allocation2 + $0x50] sm:$0xff]
    %v71 = vld [vmem:[#allocation2 + $0x58] sm:$0xff]
    %v72 = vld [vmem:[#allocation2 + $0x60] sm:$0xff]
    %v73 = vld [vmem:[#allocation2 + $0x68] sm:$0xff]
    %v74 = vld [vmem:[#allocation2 + $0x70] sm:$0xff]
    %v75 = vld [vmem:[#allocation2 + $0x78] sm:$0xff]
    %v76 = vld [vmem:[#allocation3] sm:$0xff]
    %v77 = vld [vmem:[#allocation3 + $0x8] sm:$0xff]
    %v78 = vld [vmem:[#allocation3 + $0x10] sm:$0xff]
    %v79 = vld [vmem:[#allocation3 + $0x18] sm:$0xff]
    %v80 = vld [vmem:[#allocation3 + $0x20] sm:$0xff]
    %v81 = vld [vmem:[#allocation3 + $0x28] sm:$0xff]
    %v82 = vld [vmem:[#allocation3 + $0x30] sm:$0xff]
    %v83 = vld [vmem:[#allocation3 + $0x38] sm:$0xff]
    %v84 = vld [vmem:[#allocation3 + $0x40] sm:$0xff]
    %v85 = vld [vmem:[#allocation3 + $0x48] sm:$0xff]
    %v86 = vld [vmem:[#allocation3 + $0x50] sm:$0xff]
    %v87 = vld [vmem:[#allocation3 + $0x58] sm:$0xff]
    %v88 = vld [vmem:[#allocation3 + $0x60] sm:$0xff]
    %v89 = vld [vmem:[#allocation3 + $0x68] sm:$0xff]
    %v90 = vld [vmem:[#allocation3 + $0x70] sm:$0xff]
    %v91 = vld [vmem:[#allocation3 + $0x78] sm:$0xff]
    %v92 = vld [vmem:[#allocation6] sm:$0xff]
    %v93 = vld [vmem:[#allocation6 + $0x8] sm:$0xff]
    %v94 = vld [vmem:[#allocation6 + $0x10] sm:$0xff]
    %v95 = vld [vmem:[#allocation6 + $0x18] sm:$0xff]
    %v96 = vld [vmem:[#allocation6 + $0x20] sm:$0xff]
    %v97 = vld [vmem:[#allocation6 + $0x28] sm:$0xff]
    %v98 = vld [vmem:[#allocation6 + $0x30] sm:$0xff]
    %v99 = vld [vmem:[#allocation6 + $0x38] sm:$0xff]
    %v100 = vld [vmem:[#allocation6 + $0x40] sm:$0xff]
    %v101 = vld [vmem:[#allocation6 + $0x48] sm:$0xff]
    %v102 = vld [vmem:[#allocation6 + $0x50] sm:$0xff]
    %v103 = vld [vmem:[#allocation6 + $0x58] sm:$0xff]
    %v104 = vld [vmem:[#allocation6 + $0x60] sm:$0xff]
    %v105 = vld [vmem:[#allocation6 + $0x68] sm:$0xff]
    %v106 = vld [vmem:[#allocation6 + $0x70] sm:$0xff]
    %v107 = vld [vmem:[#allocation6 + $0x78] sm:$0xff]
    %108 = vmatprep.subr.mxu0 0.0
    %109 = vmatpush1.msra.mxu0 %v92
    %110 = vmatprep.subr.mxu0 0.0
    %111 = vmatpush1.msra.mxu0 %v93
    %112 = vmatprep.subr.mxu0 0.0
    %113 = vmatpush1.msra.mxu0 %v94
    %114 = vmatprep.subr.mxu0 0.0
    %115 = vmatpush1.msra.mxu0 %v95
    %116 = vmatprep.subr.mxu0 0.0
    %117 = vmatpush1.msra.mxu0 %v96
    %118 = vmatprep.subr.mxu0 0.0
    %119 = vmatpush1.msra.mxu0 %v97
    %120 = vmatprep.subr.mxu0 0.0
    %121 = vmatpush1.msra.mxu0 %v98
    %122 = vmatprep.subr.mxu0 0.0
    %123 = vmatpush1.msra.mxu0 %v99
    %124 = vmatprep.subr.mxu0 0.0
    %125 = vmatpush1.msra.mxu0 %v100
    %126 = vmatprep.subr.mxu0 0.0
    %127 = vmatpush1.msra.mxu0 %v101
    %128 = vmatprep.subr.mxu0 0.0
    %129 = vmatpush1.msra.mxu0 %v102
    %130 = vmatprep.subr.mxu0 0.0
    %131 = vmatpush1.msra.mxu0 %v103
    %132 = vmatprep.subr.mxu0 0.0
    %133 = vmatpush1.msra.mxu0 %v104
    %134 = vmatprep.subr.mxu0 0.0
    %135 = vmatpush1.msra.mxu0 %v105
    %136 = vmatprep.subr.mxu0 0.0
    %137 = vmatpush1.msra.mxu0 %v106
    %138 = vmatprep.subr.mxu0 0.0
    %139 = vmatpush1.msra.mxu0 %v107
    %140 = vmatprep.subr.mxu0 0.0
    %141 = vmatpush1.msra.mxu0 0.0
    %142 = vmatprep.subr.mxu0 0.0
    %143 = vmatpush1.msra.mxu0 0.0
    %144 = vmatprep.subr.mxu0 0.0
    %145 = vmatpush1.msra.mxu0 0.0
    %146 = vmatprep.subr.mxu0 0.0
    %147 = vmatpush1.msra.mxu0 0.0
    %148 = vmatprep.subr.mxu0 0.0
    %149 = vmatpush1.msra.mxu0 0.0
    %150 = vmatprep.subr.mxu0 0.0
    %151 = vmatpush1.msra.mxu0 0.0
    %152 = vmatprep.subr.mxu0 0.0
    %153 = vmatpush1.msra.mxu0 0.0
    %154 = vmatprep.subr.mxu0 0.0
    %155 = vmatpush1.msra.mxu0 0.0
    %156 = vmatprep.subr.mxu0 0.0
    %157 = vmatpush1.msra.mxu0 0.0
    %158 = vmatprep.subr.mxu0 0.0
    %159 = vmatpush1.msra.mxu0 0.0
    %160 = vmatprep.subr.mxu0 0.0
    %161 = vmatpush1.msra.mxu0 0.0
    %162 = vmatprep.subr.mxu0 0.0
    %163 = vmatpush1.msra.mxu0 0.0
    %164 = vmatprep.subr.mxu0 0.0
    %165 = vmatpush1.msra.mxu0 0.0
    %166 = vmatprep.subr.mxu0 0.0
    %167 = vmatpush1.msra.mxu0 0.0
    %168 = vmatprep.subr.mxu0 0.0
    %169 = vmatpush1.msra.mxu0 0.0
    %170 = vmatprep.subr.mxu0 0.0
    %171 = vmatpush1.msra.mxu0 0.0
    %172 = vmatprep.mubr.f32.mxu0 0.0
    %173 = vmatmul.mubr.f32.gmra.mrb[0].mxu0 %v76
    %v174 = vpop.f32.mrb[0].mxu0
    %v175 = vadd.f32 0.0, %v174
    %v176 = vpop.f32.mrb[0].mxu0
    %177 = vmatprep.mubr.f32.mxu0 0.0
    %178 = vmatmul.mubr.f32.gmra.mrb[0].mxu0 %v77
    %v179 = vpop.f32.mrb[0].mxu0
    %v180 = vadd.f32 0.0, %v179
    %v181 = vpop.f32.mrb[0].mxu0
    %182 = vmatprep.mubr.f32.mxu0 0.0
    %183 = vmatmul.mubr.f32.gmra.mrb[0].mxu0 %v78
    %v184 = vpop.f32.mrb[0].mxu0
    %v185 = vadd.f32 0.0, %v184
    %v186 = vpop.f32.mrb[0].mxu0
    %187 = vmatprep.mubr.f32.mxu0 0.0
    %188 = vmatmul.mubr.f32.gmra.mrb[0].mxu0 %v79
    %v189 = vpop.f32.mrb[0].mxu0
    %v190 = vadd.f32 0.0, %v189
    %v191 = vpop.f32.mrb[0].mxu0
    %192 = vmatprep.mubr.f32.mxu0 0.0
    %193 = vmatmul.mubr.f32.gmra.mrb[0].mxu0 %v80
    %v194 = vpop.f32.mrb[0].mxu0
    %v195 = vadd.f32 0.0, %v194
    %v196 = vpop.f32.mrb[0].mxu0
    %197 = vmatprep.mubr.f32.mxu0 0.0
    %198 = vmatmul.mubr.f32.gmra.mrb[0].mxu0 %v81
    %v199 = vpop.f32.mrb[0].mxu0
    %v200 = vadd.f32 0.0, %v199
    %v201 = vpop.f32.mrb[0].mxu0
    %202 = vmatprep.mubr.f32.mxu0 0.0
    %203 = vmatmul.mubr.f32.gmra.mrb[0].mxu0 %v82
    %v204 = vpop.f32.mrb[0].mxu0
    %v205 = vadd.f32 0.0, %v204
    %v206 = vpop.f32.mrb[0].mxu0
    %207 = vmatprep.mubr.f32.mxu0 0.0
    %208 = vmatmul.mubr.f32.gmra.mrb[0].mxu0 %v83
    %v209 = vpop.f32.mrb[0].mxu0
    %v210 = vadd.f32 0.0, %v209
    %v211 = vpop.f32.mrb[0].mxu0
    %212 = vmatprep.mubr.f32.mxu0 0.0
    %213 = vmatmul.mubr.f32.gmra.mrb[0].mxu0 %v84
    %v214 = vpop.f32.mrb[0].mxu0
    %v215 = vadd.f32 0.0, %v214
    %v216 = vpop.f32.mrb[0].mxu0
    %217 = vmatprep.mubr.f32.mxu0 0.0
    %218 = vmatmul.mubr.f32.gmra.mrb[0].mxu0 %v85
    %v219 = vpop.f32.mrb[0].mxu0
    %v220 = vadd.f32 0.0, %v219
    %v221 = vpop.f32.mrb[0].mxu0
    %222 = vmatprep.mubr.f32.mxu0 0.0
    %223 = vmatmul.mubr.f32.gmra.mrb[0].mxu0 %v86
    %v224 = vpop.f32.mrb[0].mxu0
    %v225 = vadd.f32 0.0, %v224
    %v226 = vpop.f32.mrb[0].mxu0
    %227 = vmatprep.mubr.f32.mxu0 0.0
    %228 = vmatmul.mubr.f32.gmra.mrb[0].mxu0 %v87
    %v229 = vpop.f32.mrb[0].mxu0
    %v230 = vadd.f32 0.0, %v229
    %v231 = vpop.f32.mrb[0].mxu0
    %232 = vmatprep.mubr.f32.mxu0 0.0
    %233 = vmatmul.mubr.f32.gmra.mrb[0].mxu0 %v88
    %v234 = vpop.f32.mrb[0].mxu0
    %v235 = vadd.f32 0.0, %v234
    %v236 = vpop.f32.mrb[0].mxu0
    %237 = vmatprep.mubr.f32.mxu0 0.0
    %238 = vmatmul.mubr.f32.gmra.mrb[0].mxu0 %v89
    %v239 = vpop.f32.mrb[0].mxu0
    %v240 = vadd.f32 0.0, %v239
    %v241 = vpop.f32.mrb[0].mxu0
    %242 = vmatprep.mubr.f32.mxu0 0.0
    %243 = vmatmul.mubr.f32.gmra.mrb[0].mxu0 %v90
    %v244 = vpop.f32.mrb[0].mxu0
    %v245 = vadd.f32 0.0, %v244
    %v246 = vpop.f32.mrb[0].mxu0
    %247 = vmatprep.mubr.f32.mxu0 0.0
    %248 = vmatmul.mubr.f32.gmra.mrb[0].mxu0 %v91
    %v249 = vpop.f32.mrb[0].mxu0
    %v250 = vadd.f32 0.0, %v249
    %v251 = vpop.f32.mrb[0].mxu0
    %252 = vdwg.mxu0
    %v253 = vadd.f32 %v60, %v175
    %v254 = vadd.f32 %v61, %v180
    %v255 = vadd.f32 %v62, %v185
    %v256 = vadd.f32 %v63, %v190
    %v257 = vadd.f32 %v64, %v195
    %v258 = vadd.f32 %v65, %v200
    %v259 = vadd.f32 %v66, %v205
    %v260 = vadd.f32 %v67, %v210
    %v261 = vadd.f32 %v68, %v215
    %v262 = vadd.f32 %v69, %v220
    %v263 = vadd.f32 %v70, %v225
    %v264 = vadd.f32 %v71, %v230
    %v265 = vadd.f32 %v72, %v235
    %v266 = vadd.f32 %v73, %v240
    %v267 = vadd.f32 %v74, %v245
    %v268 = vadd.f32 %v75, %v250
    %269 = vst [vmem:[#allocation2] sm:$0xff] %v253
    %270 = vst [vmem:[#allocation2 + $0x8] sm:$0xff] %v254
    %271 = vst [vmem:[#allocation2 + $0x10] sm:$0xff] %v255
    %272 = vst [vmem:[#allocation2 + $0x18] sm:$0xff] %v256
    %273 = vst [vmem:[#allocation2 + $0x20] sm:$0xff] %v257
    %274 = vst [vmem:[#allocation2 + $0x28] sm:$0xff] %v258
    %275 = vst [vmem:[#allocation2 + $0x30] sm:$0xff] %v259
    %276 = vst [vmem:[#allocation2 + $0x38] sm:$0xff] %v260
    %277 = vst [vmem:[#allocation2 + $0x40] sm:$0xff] %v261
    %278 = vst [vmem:[#allocation2 + $0x48] sm:$0xff] %v262
    %279 = vst [vmem:[#allocation2 + $0x50] sm:$0xff] %v263
    %280 = vst [vmem:[#allocation2 + $0x58] sm:$0xff] %v264
    %281 = vst [vmem:[#allocation2 + $0x60] sm:$0xff] %v265
    %282 = vst [vmem:[#allocation2 + $0x68] sm:$0xff] %v266
    %283 = vst [vmem:[#allocation2 + $0x70] sm:$0xff] %v267
    %284 = vst [vmem:[#allocation2 + $0x78] sm:$0xff] %v268
    // Predicated region
    $region22: #{graph_convolution_forward.2} parent=1 // pred_check
      %p285 = pneg %p40
    $region23: #{graph_convolution_forward.2} parent=1 // pred_check_branch
      %287 = sbr.rel (%p285) target = $region25
    $region24: #{graph_convolution_forward.2} parent=1 // pred_region
      %v288 = vld [vmem:[#allocation2] sm:$0xff]
      %v289 = vld [vmem:[#allocation2 + $0x8] sm:$0xff]
      %v290 = vld [vmem:[#allocation2 + $0x10] sm:$0xff]
      %v291 = vld [vmem:[#allocation2 + $0x18] sm:$0xff]
      %v292 = vld [vmem:[#allocation2 + $0x20] sm:$0xff]
      %v293 = vld [vmem:[#allocation2 + $0x28] sm:$0xff]
      %v294 = vld [vmem:[#allocation2 + $0x30] sm:$0xff]
      %v295 = vld [vmem:[#allocation2 + $0x38] sm:$0xff]
      %v296 = vld [vmem:[#allocation2 + $0x40] sm:$0xff]
      %v297 = vld [vmem:[#allocation2 + $0x48] sm:$0xff]
      %v298 = vld [vmem:[#allocation2 + $0x50] sm:$0xff]
      %v299 = vld [vmem:[#allocation2 + $0x58] sm:$0xff]
      %v300 = vld [vmem:[#allocation2 + $0x60] sm:$0xff]
      %v301 = vld [vmem:[#allocation2 + $0x68] sm:$0xff]
      %v302 = vld [vmem:[#allocation2 + $0x70] sm:$0xff]
      %v303 = vld [vmem:[#allocation2 + $0x78] sm:$0xff]
      %304 = vst [vmem:[#allocation8] sm:$0xff] %v288
      %305 = vst [vmem:[#allocation8 + $0x8] sm:$0xff] %v289
      %306 = vst [vmem:[#allocation8 + $0x10] sm:$0xff] %v290
      %307 = vst [vmem:[#allocation8 + $0x18] sm:$0xff] %v291
      %308 = vst [vmem:[#allocation8 + $0x20] sm:$0xff] %v292
      %309 = vst [vmem:[#allocation8 + $0x28] sm:$0xff] %v293
      %310 = vst [vmem:[#allocation8 + $0x30] sm:$0xff] %v294
      %311 = vst [vmem:[#allocation8 + $0x38] sm:$0xff] %v295
      %312 = vst [vmem:[#allocation8 + $0x40] sm:$0xff] %v296
      %313 = vst [vmem:[#allocation8 + $0x48] sm:$0xff] %v297
      %314 = vst [vmem:[#allocation8 + $0x50] sm:$0xff] %v298
      %315 = vst [vmem:[#allocation8 + $0x58] sm:$0xff] %v299
      %316 = vst [vmem:[#allocation8 + $0x60] sm:$0xff] %v300
      %317 = vst [vmem:[#allocation8 + $0x68] sm:$0xff] %v301
      %318 = vst [vmem:[#allocation8 + $0x70] sm:$0xff] %v302
      %319 = vst [vmem:[#allocation8 + $0x78] sm:$0xff] %v303
    $region25: #{graph_convolution_forward.2} parent=1 // pred_fallthru
      _
    // Predicated region
    $region26: #{graph_convolution_forward.2} parent=1 // pred_check
      _
    $region27: #{graph_convolution_forward.2} parent=1 // pred_check_branch
      %321 = sbr.rel (0) target = $region29
    $region28: #{graph_convolution_forward.2} parent=1 // pred_region
      %s323 = ssub.s32 2048, 2048
      %324 = vsyncadd [#allocation5], %s323
      %s325 = sshll.u32 [#allocation8], 4
      %s326 = int_to_ptr.vmem [resolvable:$true] %s325
      %331 = dma.vmem_to_hbm [thread:$0]  %s326, 2048, %s2, [#allocation5], 128, 128, 8
    $region29: #{graph_convolution_forward.2} parent=1 // pred_fallthru
      _
    // Predicated region
    $region30: #{graph_convolution_forward.2} parent=1 // pred_check
      _
    $region31: #{graph_convolution_forward.2} parent=1 // pred_check_branch
      %333 = sbr.rel (0) target = $region33
    $region32: #{graph_convolution_forward.2} parent=1 // pred_region
      %334 = dma.done [#allocation5], 2048
    $region33: #{graph_convolution_forward.2} parent=1 // pred_fallthru
      _
    %335 = vsyncpa [#allocation4], 1
    %336 = vsyncpa [#allocation7], 1
    %337 = vsyncpa [#allocation5], 1

// kernel: graph_convolution_forward.3
$region0: #{graph_convolution_forward.3}
  #allocation0 [shape = 'u32[]', space=smem, size = 0x4, offset = 0x4, fixed_abs, tag = 'smem constant byte address 0x4 - core index']
  #allocation1 [shape = 'u32[144,128]{1,0:T(1,128)}', space=vmem, size = 0x12000, scoped, tag = 'internal scratch']
  #allocation2 [shape = 'f32[128,128]{1,0:T(8,128)}', space=vmem, size = 0x10000, scoped, tag = 'scratch operand']
  %s0 = inlined_call_operand.hbm [shape: f32[128,128], index: 0, kind: input, shape index: {}]
  %s1 = inlined_call_operand.hbm [shape: f32[128,128], index: 1, kind: input, shape index: {}]
  %s2 = inlined_call_operand.hbm [shape: f32[1,128], index: 2, kind: input, shape index: {}]
  %s3 = inlined_call_operand.hbm [shape: f32[128,128], index: 3, kind: output, shape index: {}]
  %s4 = sld [smem:[#allocation0]]
  $region42: #{graph_convolution_forward.3} parent=0
    _
  %s6 = ssub.s32 1, %s4
  %s7 = scalar_select 0, %s6, %s4
  $region1: #{graph_convolution_forward.3} parent=0
    #allocation3 [shape = 'u8[65536]{0}', space=vmem, size = 0x10000, scoped, tag = 'input window, operand 0, single buffered']
    #allocation4 [shape = 's32[1]{0}', space=sflag, size = 0x4, scoped, tag = 'scoped memory for graph_convolution_forward.3']
    #allocation5 [shape = 's32[1]{0}', space=sflag, size = 0x4, scoped, tag = 'scoped memory for graph_convolution_forward.3']
    #allocation6 [shape = 'u8[65536]{0}', space=vmem, size = 0x10000, scoped, tag = 'input window, operand 1, single buffered']
    #allocation7 [shape = 's32[1]{0}', space=sflag, size = 0x4, scoped, tag = 'scoped memory for graph_convolution_forward.3']
    #allocation8 [shape = 'u8[512]{0}', space=vmem, size = 0x400, scoped, tag = 'input window, operand 2, single buffered']
    #allocation9 [shape = 'u8[65536]{0}', space=vmem, size = 0x10000, scoped, tag = 'output window, operand 0, single buffered']
    %8 = vsyncpa [#allocation4], 0
    %9 = vsyncpa [#allocation7], 0
    %10 = vsyncpa [#allocation5], 0
    // Predicated region
    $region2: #{graph_convolution_forward.3} parent=1 // pred_check
      _
    $region3: #{graph_convolution_forward.3} parent=1 // pred_check_branch
      %12 = sbr.rel (0) target = $region5
    $region4: #{graph_convolution_forward.3} parent=1 // pred_region
      %s14 = ssub.s32 2048, 2048
      %15 = vsyncadd [#allocation4], %s14
      %s16 = sshll.u32 [#allocation3], 4
      %s17 = int_to_ptr.vmem [resolvable:$true] %s16
      %22 = dma.hbm_to_vmem [thread:$0]  %s0, 2048, %s17, [#allocation4], 128, 128, 8
    $region5: #{graph_convolution_forward.3} parent=1 // pred_fallthru
      _
    // Predicated region
    $region6: #{graph_convolution_forward.3} parent=1 // pred_check
      _
    $region7: #{graph_convolution_forward.3} parent=1 // pred_check_branch
      %24 = sbr.rel (0) target = $region9
    $region8: #{graph_convolution_forward.3} parent=1 // pred_region
      %s26 = ssub.s32 2048, 2048
      %27 = vsyncadd [#allocation7], %s26
      %s28 = sshll.u32 [#allocation6], 4
      %s29 = int_to_ptr.vmem [resolvable:$true] %s28
      %34 = dma.hbm_to_vmem [thread:$0]  %s1, 2048, %s29, [#allocation7], 128, 128, 8
    $region9: #{graph_convolution_forward.3} parent=1 // pred_fallthru
      _
    // Predicated region
    $region10: #{graph_convolution_forward.3} parent=1 // pred_check
      _
    $region11: #{graph_convolution_forward.3} parent=1 // pred_check_branch
      %36 = sbr.rel (0) target = $region13
    $region12: #{graph_convolution_forward.3} parent=1 // pred_region
      %s38 = ssub.s32 16, 16
      %39 = vsyncadd [#allocation7], %s38
      %s41 = sshll.u32 [#allocation8], 4
      %s42 = int_to_ptr.vmem [resolvable:$true] %s41
      %44 = dma.hbm_to_vmem [thread:$0]  %s2, 16, %s42, [#allocation7]
    $region13: #{graph_convolution_forward.3} parent=1 // pred_fallthru
      _
    // Predicated region
    $region14: #{graph_convolution_forward.3} parent=1 // pred_check
      _
    $region15: #{graph_convolution_forward.3} parent=1 // pred_check_branch
      %46 = sbr.rel (0) target = $region17
    $region16: #{graph_convolution_forward.3} parent=1 // pred_region
      %47 = dma.done [#allocation4], 2048
    $region17: #{graph_convolution_forward.3} parent=1 // pred_fallthru
      _
    // Predicated region
    $region18: #{graph_convolution_forward.3} parent=1 // pred_check
      _
    $region19: #{graph_convolution_forward.3} parent=1 // pred_check_branch
      %49 = sbr.rel (0) target = $region21
    $region20: #{graph_convolution_forward.3} parent=1 // pred_region
      %50 = dma.done [#allocation7], 2048
    $region21: #{graph_convolution_forward.3} parent=1 // pred_fallthru
      _
    // Predicated region
    $region22: #{graph_convolution_forward.3} parent=1 // pred_check
      _
    $region23: #{graph_convolution_forward.3} parent=1 // pred_check_branch
      %52 = sbr.rel (0) target = $region25
    $region24: #{graph_convolution_forward.3} parent=1 // pred_region
      %53 = dma.done [#allocation7], 16
    $region25: #{graph_convolution_forward.3} parent=1 // pred_fallthru
      _
    %p54 = scmp.eq.s32.totalorder 0, 0
    // Predicated region
    $region26: #{graph_convolution_forward.3} parent=1 // pred_check
      %p55 = pneg %p54
    $region27: #{graph_convolution_forward.3} parent=1 // pred_check_branch
      %57 = sbr.rel (%p55) target = $region29
    $region28: #{graph_convolution_forward.3} parent=1 // pred_region
      %58 = vst [vmem:[#allocation2] sm:$0xff] 0.0
      %59 = vst [vmem:[#allocation2 + $0x8] sm:$0xff] 0.0
      %60 = vst [vmem:[#allocation2 + $0x10] sm:$0xff] 0.0
      %61 = vst [vmem:[#allocation2 + $0x18] sm:$0xff] 0.0
      %62 = vst [vmem:[#allocation2 + $0x20] sm:$0xff] 0.0
      %63 = vst [vmem:[#allocation2 + $0x28] sm:$0xff] 0.0
      %64 = vst [vmem:[#allocation2 + $0x30] sm:$0xff] 0.0
      %65 = vst [vmem:[#allocation2 + $0x38] sm:$0xff] 0.0
      %66 = vst [vmem:[#allocation2 + $0x40] sm:$0xff] 0.0
      %67 = vst [vmem:[#allocation2 + $0x48] sm:$0xff] 0.0
      %68 = vst [vmem:[#allocation2 + $0x50] sm:$0xff] 0.0
      %69 = vst [vmem:[#allocation2 + $0x58] sm:$0xff] 0.0
      %70 = vst [vmem:[#allocation2 + $0x60] sm:$0xff] 0.0
      %71 = vst [vmem:[#allocation2 + $0x68] sm:$0xff] 0.0
      %72 = vst [vmem:[#allocation2 + $0x70] sm:$0xff] 0.0
      %73 = vst [vmem:[#allocation2 + $0x78] sm:$0xff] 0.0
    $region29: #{graph_convolution_forward.3} parent=1 // pred_fallthru
      _
    %v74 = vld [vmem:[#allocation2] sm:$0xff]
    %v75 = vld [vmem:[#allocation2 + $0x8] sm:$0xff]
    %v76 = vld [vmem:[#allocation2 + $0x10] sm:$0xff]
    %v77 = vld [vmem:[#allocation2 + $0x18] sm:$0xff]
    %v78 = vld [vmem:[#allocation2 + $0x20] sm:$0xff]
    %v79 = vld [vmem:[#allocation2 + $0x28] sm:$0xff]
    %v80 = vld [vmem:[#allocation2 + $0x30] sm:$0xff]
    %v81 = vld [vmem:[#allocation2 + $0x38] sm:$0xff]
    %v82 = vld [vmem:[#allocation2 + $0x40] sm:$0xff]
    %v83 = vld [vmem:[#allocation2 + $0x48] sm:$0xff]
    %v84 = vld [vmem:[#allocation2 + $0x50] sm:$0xff]
    %v85 = vld [vmem:[#allocation2 + $0x58] sm:$0xff]
    %v86 = vld [vmem:[#allocation2 + $0x60] sm:$0xff]
    %v87 = vld [vmem:[#allocation2 + $0x68] sm:$0xff]
    %v88 = vld [vmem:[#allocation2 + $0x70] sm:$0xff]
    %v89 = vld [vmem:[#allocation2 + $0x78] sm:$0xff]
    %v90 = vld [vmem:[#allocation3] sm:$0xff]
    %v91 = vld [vmem:[#allocation3 + $0x8] sm:$0xff]
    %v92 = vld [vmem:[#allocation3 + $0x10] sm:$0xff]
    %v93 = vld [vmem:[#allocation3 + $0x18] sm:$0xff]
    %v94 = vld [vmem:[#allocation3 + $0x20] sm:$0xff]
    %v95 = vld [vmem:[#allocation3 + $0x28] sm:$0xff]
    %v96 = vld [vmem:[#allocation3 + $0x30] sm:$0xff]
    %v97 = vld [vmem:[#allocation3 + $0x38] sm:$0xff]
    %v98 = vld [vmem:[#allocation3 + $0x40] sm:$0xff]
    %v99 = vld [vmem:[#allocation3 + $0x48] sm:$0xff]
    %v100 = vld [vmem:[#allocation3 + $0x50] sm:$0xff]
    %v101 = vld [vmem:[#allocation3 + $0x58] sm:$0xff]
    %v102 = vld [vmem:[#allocation3 + $0x60] sm:$0xff]
    %v103 = vld [vmem:[#allocation3 + $0x68] sm:$0xff]
    %v104 = vld [vmem:[#allocation3 + $0x70] sm:$0xff]
    %v105 = vld [vmem:[#allocation3 + $0x78] sm:$0xff]
    %v106 = vld [vmem:[#allocation6] sm:$0xff]
    %v107 = vld [vmem:[#allocation6 + $0x8] sm:$0xff]
    %v108 = vld [vmem:[#allocation6 + $0x10] sm:$0xff]
    %v109 = vld [vmem:[#allocation6 + $0x18] sm:$0xff]
    %v110 = vld [vmem:[#allocation6 + $0x20] sm:$0xff]
    %v111 = vld [vmem:[#allocation6 + $0x28] sm:$0xff]
    %v112 = vld [vmem:[#allocation6 + $0x30] sm:$0xff]
    %v113 = vld [vmem:[#allocation6 + $0x38] sm:$0xff]
    %v114 = vld [vmem:[#allocation6 + $0x40] sm:$0xff]
    %v115 = vld [vmem:[#allocation6 + $0x48] sm:$0xff]
    %v116 = vld [vmem:[#allocation6 + $0x50] sm:$0xff]
    %v117 = vld [vmem:[#allocation6 + $0x58] sm:$0xff]
    %v118 = vld [vmem:[#allocation6 + $0x60] sm:$0xff]
    %v119 = vld [vmem:[#allocation6 + $0x68] sm:$0xff]
    %v120 = vld [vmem:[#allocation6 + $0x70] sm:$0xff]
    %v121 = vld [vmem:[#allocation6 + $0x78] sm:$0xff]
    %122 = vmatprep.subr.mxu0 0.0
    %123 = vmatpush1.msra.mxu0 %v106
    %124 = vmatprep.subr.mxu0 0.0
    %125 = vmatpush1.msra.mxu0 %v107
    %126 = vmatprep.subr.mxu0 0.0
    %127 = vmatpush1.msra.mxu0 %v108
    %128 = vmatprep.subr.mxu0 0.0
    %129 = vmatpush1.msra.mxu0 %v109
    %130 = vmatprep.subr.mxu0 0.0
    %131 = vmatpush1.msra.mxu0 %v110
    %132 = vmatprep.subr.mxu0 0.0
    %133 = vmatpush1.msra.mxu0 %v111
    %134 = vmatprep.subr.mxu0 0.0
    %135 = vmatpush1.msra.mxu0 %v112
    %136 = vmatprep.subr.mxu0 0.0
    %137 = vmatpush1.msra.mxu0 %v113
    %138 = vmatprep.subr.mxu0 0.0
    %139 = vmatpush1.msra.mxu0 %v114
    %140 = vmatprep.subr.mxu0 0.0
    %141 = vmatpush1.msra.mxu0 %v115
    %142 = vmatprep.subr.mxu0 0.0
    %143 = vmatpush1.msra.mxu0 %v116
    %144 = vmatprep.subr.mxu0 0.0
    %145 = vmatpush1.msra.mxu0 %v117
    %146 = vmatprep.subr.mxu0 0.0
    %147 = vmatpush1.msra.mxu0 %v118
    %148 = vmatprep.subr.mxu0 0.0
    %149 = vmatpush1.msra.mxu0 %v119
    %150 = vmatprep.subr.mxu0 0.0
    %151 = vmatpush1.msra.mxu0 %v120
    %152 = vmatprep.subr.mxu0 0.0
    %153 = vmatpush1.msra.mxu0 %v121
    %154 = vmatprep.subr.mxu0 0.0
    %155 = vmatpush1.msra.mxu0 0.0
    %156 = vmatprep.subr.mxu0 0.0
    %157 = vmatpush1.msra.mxu0 0.0
    %158 = vmatprep.subr.mxu0 0.0
    %159 = vmatpush1.msra.mxu0 0.0
    %160 = vmatprep.subr.mxu0 0.0
    %161 = vmatpush1.msra.mxu0 0.0
    %162 = vmatprep.subr.mxu0 0.0
    %163 = vmatpush1.msra.mxu0 0.0
    %164 = vmatprep.subr.mxu0 0.0
    %165 = vmatpush1.msra.mxu0 0.0
    %166 = vmatprep.subr.mxu0 0.0
    %167 = vmatpush1.msra.mxu0 0.0
    %168 = vmatprep.subr.mxu0 0.0
    %169 = vmatpush1.msra.mxu0 0.0
    %170 = vmatprep.subr.mxu0 0.0
    %171 = vmatpush1.msra.mxu0 0.0
    %172 = vmatprep.subr.mxu0 0.0
    %173 = vmatpush1.msra.mxu0 0.0
    %174 = vmatprep.subr.mxu0 0.0
    %175 = vmatpush1.msra.mxu0 0.0
    %176 = vmatprep.subr.mxu0 0.0
    %177 = vmatpush1.msra.mxu0 0.0
    %178 = vmatprep.subr.mxu0 0.0
    %179 = vmatpush1.msra.mxu0 0.0
    %180 = vmatprep.subr.mxu0 0.0
    %181 = vmatpush1.msra.mxu0 0.0
    %182 = vmatprep.subr.mxu0 0.0
    %183 = vmatpush1.msra.mxu0 0.0
    %184 = vmatprep.subr.mxu0 0.0
    %185 = vmatpush1.msra.mxu0 0.0
    %186 = vmatprep.mubr.f32.mxu0 0.0
    %187 = vmatmul.mubr.f32.gmra.mrb[0].mxu0 %v90
    %v188 = vpop.f32.mrb[0].mxu0
    %v189 = vadd.f32 0.0, %v188
    %v190 = vpop.f32.mrb[0].mxu0
    %191 = vmatprep.mubr.f32.mxu0 0.0
    %192 = vmatmul.mubr.f32.gmra.mrb[0].mxu0 %v91
    %v193 = vpop.f32.mrb[0].mxu0
    %v194 = vadd.f32 0.0, %v193
    %v195 = vpop.f32.mrb[0].mxu0
    %196 = vmatprep.mubr.f32.mxu0 0.0
    %197 = vmatmul.mubr.f32.gmra.mrb[0].mxu0 %v92
    %v198 = vpop.f32.mrb[0].mxu0
    %v199 = vadd.f32 0.0, %v198
    %v200 = vpop.f32.mrb[0].mxu0
    %201 = vmatprep.mubr.f32.mxu0 0.0
    %202 = vmatmul.mubr.f32.gmra.mrb[0].mxu0 %v93
    %v203 = vpop.f32.mrb[0].mxu0
    %v204 = vadd.f32 0.0, %v203
    %v205 = vpop.f32.mrb[0].mxu0
    %206 = vmatprep.mubr.f32.mxu0 0.0
    %207 = vmatmul.mubr.f32.gmra.mrb[0].mxu0 %v94
    %v208 = vpop.f32.mrb[0].mxu0
    %v209 = vadd.f32 0.0, %v208
    %v210 = vpop.f32.mrb[0].mxu0
    %211 = vmatprep.mubr.f32.mxu0 0.0
    %212 = vmatmul.mubr.f32.gmra.mrb[0].mxu0 %v95
    %v213 = vpop.f32.mrb[0].mxu0
    %v214 = vadd.f32 0.0, %v213
    %v215 = vpop.f32.mrb[0].mxu0
    %216 = vmatprep.mubr.f32.mxu0 0.0
    %217 = vmatmul.mubr.f32.gmra.mrb[0].mxu0 %v96
    %v218 = vpop.f32.mrb[0].mxu0
    %v219 = vadd.f32 0.0, %v218
    %v220 = vpop.f32.mrb[0].mxu0
    %221 = vmatprep.mubr.f32.mxu0 0.0
    %222 = vmatmul.mubr.f32.gmra.mrb[0].mxu0 %v97
    %v223 = vpop.f32.mrb[0].mxu0
    %v224 = vadd.f32 0.0, %v223
    %v225 = vpop.f32.mrb[0].mxu0
    %226 = vmatprep.mubr.f32.mxu0 0.0
    %227 = vmatmul.mubr.f32.gmra.mrb[0].mxu0 %v98
    %v228 = vpop.f32.mrb[0].mxu0
    %v229 = vadd.f32 0.0, %v228
    %v230 = vpop.f32.mrb[0].mxu0
    %231 = vmatprep.mubr.f32.mxu0 0.0
    %232 = vmatmul.mubr.f32.gmra.mrb[0].mxu0 %v99
    %v233 = vpop.f32.mrb[0].mxu0
    %v234 = vadd.f32 0.0, %v233
    %v235 = vpop.f32.mrb[0].mxu0
    %236 = vmatprep.mubr.f32.mxu0 0.0
    %237 = vmatmul.mubr.f32.gmra.mrb[0].mxu0 %v100
    %v238 = vpop.f32.mrb[0].mxu0
    %v239 = vadd.f32 0.0, %v238
    %v240 = vpop.f32.mrb[0].mxu0
    %241 = vmatprep.mubr.f32.mxu0 0.0
    %242 = vmatmul.mubr.f32.gmra.mrb[0].mxu0 %v101
    %v243 = vpop.f32.mrb[0].mxu0
    %v244 = vadd.f32 0.0, %v243
    %v245 = vpop.f32.mrb[0].mxu0
    %246 = vmatprep.mubr.f32.mxu0 0.0
    %247 = vmatmul.mubr.f32.gmra.mrb[0].mxu0 %v102
    %v248 = vpop.f32.mrb[0].mxu0
    %v249 = vadd.f32 0.0, %v248
    %v250 = vpop.f32.mrb[0].mxu0
    %251 = vmatprep.mubr.f32.mxu0 0.0
    %252 = vmatmul.mubr.f32.gmra.mrb[0].mxu0 %v103
    %v253 = vpop.f32.mrb[0].mxu0
    %v254 = vadd.f32 0.0, %v253
    %v255 = vpop.f32.mrb[0].mxu0
    %256 = vmatprep.mubr.f32.mxu0 0.0
    %257 = vmatmul.mubr.f32.gmra.mrb[0].mxu0 %v104
    %v258 = vpop.f32.mrb[0].mxu0
    %v259 = vadd.f32 0.0, %v258
    %v260 = vpop.f32.mrb[0].mxu0
    %261 = vmatprep.mubr.f32.mxu0 0.0
    %262 = vmatmul.mubr.f32.gmra.mrb[0].mxu0 %v105
    %v263 = vpop.f32.mrb[0].mxu0
    %v264 = vadd.f32 0.0, %v263
    %v265 = vpop.f32.mrb[0].mxu0
    %266 = vdwg.mxu0
    %v267 = vadd.f32 %v74, %v189
    %v268 = vadd.f32 %v75, %v194
    %v269 = vadd.f32 %v76, %v199
    %v270 = vadd.f32 %v77, %v204
    %v271 = vadd.f32 %v78, %v209
    %v272 = vadd.f32 %v79, %v214
    %v273 = vadd.f32 %v80, %v219
    %v274 = vadd.f32 %v81, %v224
    %v275 = vadd.f32 %v82, %v229
    %v276 = vadd.f32 %v83, %v234
    %v277 = vadd.f32 %v84, %v239
    %v278 = vadd.f32 %v85, %v244
    %v279 = vadd.f32 %v86, %v249
    %v280 = vadd.f32 %v87, %v254
    %v281 = vadd.f32 %v88, %v259
    %v282 = vadd.f32 %v89, %v264
    %283 = vst [vmem:[#allocation2] sm:$0xff] %v267
    %284 = vst [vmem:[#allocation2 + $0x8] sm:$0xff] %v268
    %285 = vst [vmem:[#allocation2 + $0x10] sm:$0xff] %v269
    %286 = vst [vmem:[#allocation2 + $0x18] sm:$0xff] %v270
    %287 = vst [vmem:[#allocation2 + $0x20] sm:$0xff] %v271
    %288 = vst [vmem:[#allocation2 + $0x28] sm:$0xff] %v272
    %289 = vst [vmem:[#allocation2 + $0x30] sm:$0xff] %v273
    %290 = vst [vmem:[#allocation2 + $0x38] sm:$0xff] %v274
    %291 = vst [vmem:[#allocation2 + $0x40] sm:$0xff] %v275
    %292 = vst [vmem:[#allocation2 + $0x48] sm:$0xff] %v276
    %293 = vst [vmem:[#allocation2 + $0x50] sm:$0xff] %v277
    %294 = vst [vmem:[#allocation2 + $0x58] sm:$0xff] %v278
    %295 = vst [vmem:[#allocation2 + $0x60] sm:$0xff] %v279
    %296 = vst [vmem:[#allocation2 + $0x68] sm:$0xff] %v280
    %297 = vst [vmem:[#allocation2 + $0x70] sm:$0xff] %v281
    %298 = vst [vmem:[#allocation2 + $0x78] sm:$0xff] %v282
    // Predicated region
    $region30: #{graph_convolution_forward.3} parent=1 // pred_check
      %p299 = pneg %p54
    $region31: #{graph_convolution_forward.3} parent=1 // pred_check_branch
      %301 = sbr.rel (%p299) target = $region33
    $region32: #{graph_convolution_forward.3} parent=1 // pred_region
      %v302 = vld [vmem:[#allocation2] sm:$0xff]
      %v303 = vld [vmem:[#allocation2 + $0x8] sm:$0xff]
      %v304 = vld [vmem:[#allocation2 + $0x10] sm:$0xff]
      %v305 = vld [vmem:[#allocation2 + $0x18] sm:$0xff]
      %v306 = vld [vmem:[#allocation2 + $0x20] sm:$0xff]
      %v307 = vld [vmem:[#allocation2 + $0x28] sm:$0xff]
      %v308 = vld [vmem:[#allocation2 + $0x30] sm:$0xff]
      %v309 = vld [vmem:[#allocation2 + $0x38] sm:$0xff]
      %v310 = vld [vmem:[#allocation2 + $0x40] sm:$0xff]
      %v311 = vld [vmem:[#allocation2 + $0x48] sm:$0xff]
      %v312 = vld [vmem:[#allocation2 + $0x50] sm:$0xff]
      %v313 = vld [vmem:[#allocation2 + $0x58] sm:$0xff]
      %v314 = vld [vmem:[#allocation2 + $0x60] sm:$0xff]
      %v315 = vld [vmem:[#allocation2 + $0x68] sm:$0xff]
      %v316 = vld [vmem:[#allocation2 + $0x70] sm:$0xff]
      %v317 = vld [vmem:[#allocation2 + $0x78] sm:$0xff]
      %v318 = vld [vmem:[#allocation8] sm:$0x1]
      %v320 = vlaneseq
      %v321 = vshrl.u32 %v320, 7
      %v322 = vsub.s32 0, %v321
      %v323 = vrot.slane %v318, %v322
      %v325 = vadd.f32 %v302, %v323
      %v326 = vadd.f32 %v303, %v323
      %v327 = vadd.f32 %v304, %v323
      %v328 = vadd.f32 %v305, %v323
      %v329 = vadd.f32 %v306, %v323
      %v330 = vadd.f32 %v307, %v323
      %v331 = vadd.f32 %v308, %v323
      %v332 = vadd.f32 %v309, %v323
      %v333 = vadd.f32 %v310, %v323
      %v334 = vadd.f32 %v311, %v323
      %v335 = vadd.f32 %v312, %v323
      %v336 = vadd.f32 %v313, %v323
      %v337 = vadd.f32 %v314, %v323
      %v338 = vadd.f32 %v315, %v323
      %v339 = vadd.f32 %v316, %v323
      %v340 = vadd.f32 %v317, %v323
      %341 = vst [vmem:[#allocation9] sm:$0xff] %v325
      %342 = vst [vmem:[#allocation9 + $0x8] sm:$0xff] %v326
      %343 = vst [vmem:[#allocation9 + $0x10] sm:$0xff] %v327
      %344 = vst [vmem:[#allocation9 + $0x18] sm:$0xff] %v328
      %345 = vst [vmem:[#allocation9 + $0x20] sm:$0xff] %v329
      %346 = vst [vmem:[#allocation9 + $0x28] sm:$0xff] %v330
      %347 = vst [vmem:[#allocation9 + $0x30] sm:$0xff] %v331
      %348 = vst [vmem:[#allocation9 + $0x38] sm:$0xff] %v332
      %349 = vst [vmem:[#allocation9 + $0x40] sm:$0xff] %v333
      %350 = vst [vmem:[#allocation9 + $0x48] sm:$0xff] %v334
      %351 = vst [vmem:[#allocation9 + $0x50] sm:$0xff] %v335
      %352 = vst [vmem:[#allocation9 + $0x58] sm:$0xff] %v336
      %353 = vst [vmem:[#allocation9 + $0x60] sm:$0xff] %v337
      %354 = vst [vmem:[#allocation9 + $0x68] sm:$0xff] %v338
      %355 = vst [vmem:[#allocation9 + $0x70] sm:$0xff] %v339
      %356 = vst [vmem:[#allocation9 + $0x78] sm:$0xff] %v340
    $region33: #{graph_convolution_forward.3} parent=1 // pred_fallthru
      _
    // Predicated region
    $region34: #{graph_convolution_forward.3} parent=1 // pred_check
      _
    $region35: #{graph_convolution_forward.3} parent=1 // pred_check_branch
      %358 = sbr.rel (0) target = $region37
    $region36: #{graph_convolution_forward.3} parent=1 // pred_region
      %s360 = ssub.s32 2048, 2048
      %361 = vsyncadd [#allocation5], %s360
      %s362 = sshll.u32 [#allocation9], 4
      %s363 = int_to_ptr.vmem [resolvable:$true] %s362
      %368 = dma.vmem_to_hbm [thread:$0]  %s363, 2048, %s3, [#allocation5], 128, 128, 8
    $region37: #{graph_convolution_forward.3} parent=1 // pred_fallthru
      _
    // Predicated region
    $region38: #{graph_convolution_forward.3} parent=1 // pred_check
      _
    $region39: #{graph_convolution_forward.3} parent=1 // pred_check_branch
      %370 = sbr.rel (0) target = $region41
    $region40: #{graph_convolution_forward.3} parent=1 // pred_region
      %371 = dma.done [#allocation5], 2048
    $region41: #{graph_convolution_forward.3} parent=1 // pred_fallthru
      _
    %372 = vsyncpa [#allocation4], 1
    %373 = vsyncpa [#allocation7], 1
    %374 = vsyncpa [#allocation5], 1

</llo_original>
